<compile_context>
chip_gen: v7x
topology: tpu7x:2x2x1
jax: 0.10.0
libtpu: 0.0.40
codegen_flags: <defaults>
</compile_context>

<pallas_src>
import functools

import jax
import jax.numpy as jnp
from jax.experimental import pallas as pl
from jax.experimental.pallas import tpu as pltpu

_NEG = -1e30  # "minus infinity" for padded class lanes (finite -> no NaNs)


def _round_up(v, m):
    return ((v + m - 1) // m) * m


def _class_layout(n_components, n_classes):
    """Choose the lane layout for the (component, class) axes.

    Packed: every component occupies a Cslot-wide lane slot of a single 128-lane
    block (slots beyond K are -inf padding) -> component logsumexp via circular
    lane rolls.  Fallback: one 128-lane block per component.
    Returns (cslot, nslots, packed).
    """
    assert n_classes <= 128, "nb_classes > 128 not supported by this kernel"
    cslot = next(c for c in (32, 64, 128) if n_classes <= c)
    if n_components > 1 and n_components * cslot <= 128:
        return cslot, 128 // cslot, True
    return 128, n_components, False


def pack_sdgm_params(w, pi_logits):
    """Repack (w, pi_logits) into one MXU-friendly weight matrix (parameter-only prep).

    w:         (K, 2D+1, C) SDGM weights, rows = [bias, linear(D), quadratic(D)]
    pi_logits: (K, C)       mixture-prior logits (normalized jointly over (k, c))

    Returns (w_packed, meta):
      w_packed: (Hpad, nslots*cslot) f32 with Hpad = round_up(2D+1, 128)
        rows [0, D)     -> linear weights
        rows [D, 2D)    -> quadratic weights, -0.5 feature scale folded in
        row  2D         -> bias + log-prior (padded class lanes -> -1e30)
        rows (2D, Hpad) -> zeros (multiplied by the constant-1 feature block)
    """
    K, H, C = w.shape
    D = (H - 1) // 2
    assert H == 2 * D + 1, "diag-covariance SDGM expects H = 2*D + 1"
    cslot, nslots, packed = _class_layout(K, C)
    # NOTE: a multiple of 256 would match the v6e/v7x systolic depth once D >= 128;
    # 128 already fully covers D = 32 (out_features of this module).
    hpad = _round_up(2 * D + 1, 128)

    w = jnp.asarray(w, jnp.float32)
    log_pi = jax.nn.log_softmax(
        jnp.asarray(pi_logits, jnp.float32).reshape(-1)).reshape(K, C)
    bias = w[:, 0, :] + log_pi                                # (K, C) prior folded in
    lin = jnp.transpose(w[:, 1:1 + D, :], (1, 0, 2))          # (D, K, C)
    quad = jnp.transpose(-0.5 * w[:, 1 + D:, :], (1, 0, 2))   # (D, K, C), -0.5 folded

    wp = jnp.zeros((hpad, nslots, cslot), jnp.float32)
    wp = wp.at[2 * D].set(_NEG)                 # padded class lanes -> -1e30 bias
    wp = wp.at[:D, :K, :C].set(lin)
    wp = wp.at[D:2 * D, :K, :C].set(quad)
    wp = wp.at[2 * D, :K, :C].set(bias)
    wp = wp.reshape(hpad, nslots * cslot)

    meta = dict(dim=D, n_classes=C, cslot=cslot, nslots=nslots, packed=packed)
    return wp, meta


def _sdgm_kernel(x_ref, w_ref, o_ref, *, dim, n_classes, cslot, nslots, packed):
    hpad = w_ref.shape[0]
    x = x_ref[...].astype(jnp.float32)                        # (TB, D)
    tb = x.shape[0]

    # Fused feature tile [x | x^2 | 1...]; the constant-1 block covers the bias
    # row and the zero-padded weight rows, so no separate bias add is needed.
    ones = jnp.ones((tb, hpad - 2 * dim), jnp.float32)
    phi = jnp.concatenate([x, x * x, ones], axis=1)           # (TB, Hpad)

    # Single MXU matmul over all components and classes at once.
    g = jnp.dot(phi, w_ref[...], preferred_element_type=jnp.float32)

    # logsumexp over mixture components.
    if nslots == 1:
        logits = g                                            # (TB, 128)
    elif packed:
        # All components share one 128-lane block; circular XLU lane rolls give
        # the full cross-component reduce replicated into every slot, so only a
        # single exp/log pass over (TB, 128) is needed.
        m = g
        for s in range(1, nslots):
            m = jnp.maximum(m, pltpu.roll(g, shift=s * cslot, axis=1))
        p = jnp.exp(g - m)
        t = p
        for s in range(1, nslots):
            t = t + pltpu.roll(p, shift=s * cslot, axis=1)
        logits = m + jnp.log(t)                               # slot-replicated
        # Keep only the real classes of slot 0 for the class softmax (the other
        # slots hold replicated values and must not be double counted).
        lane = jax.lax.broadcasted_iota(jnp.int32, logits.shape, 1)
        logits = jnp.where(lane < n_classes, logits, _NEG)
    else:
        # One lane-aligned 128-wide block per component (layout-free slices).
        blocks = [g[:, s * cslot:(s + 1) * cslot] for s in range(nslots)]
        m = blocks[0]
        for blk in blocks[1:]:
            m = jnp.maximum(m, blk)
        t = jnp.exp(blocks[0] - m)
        for blk in blocks[1:]:
            t = t + jnp.exp(blk - m)
        logits = m + jnp.log(t)                               # (TB, 128)

    # log_softmax over classes (padded lanes are ~-1e30 -> exp underflows to 0).
    cmax = jnp.max(logits, axis=-1, keepdims=True)
    clse = jnp.log(jnp.sum(jnp.exp(logits - cmax), axis=-1, keepdims=True)) + cmax
    o_ref[...] = (logits - clse).astype(o_ref.dtype)          # full lane-dense store


def _sdgm_forward_packed(x, w_packed, meta, *, tile_b=512, out_dtype=jnp.float32,
                         core_parallel=False, weight_buffering=2):
    B, D = x.shape
    assert D == meta["dim"], "feature dim mismatch with packed params"
    C = meta["n_classes"]
    hpad, wlanes = w_packed.shape

    x = x.astype(jnp.float32)
    B8 = _round_up(B, 8)
    TB = min(tile_b, B8)
    if core_parallel:
        # Ensure >= 2 grid steps so both v7x TensorCores get work.
        TB = min(TB, max(8, _round_up(pl.cdiv(B8, 2), 8)))
    Bpad = _round_up(B8, TB)
    xp = x if Bpad == B else jnp.pad(x, ((0, Bpad - B), (0, 0)))

    kernel = functools.partial(
        _sdgm_kernel, dim=D, n_classes=C, cslot=meta["cslot"],
        nslots=meta["nslots"], packed=meta["packed"])

    w_spec_kwargs = {}
    if weight_buffering == 1:
        # Constant index_map -> double-buffering the weights is pure VMEM waste
        # (matters on v7x once D is large); opt-in knob, default keeps the safe path.
        w_spec_kwargs["pipeline_mode"] = pl.Buffered(1)
    semantics = (pltpu.CORE_PARALLEL,) if core_parallel else ("parallel",)

    out = pl.pallas_call(
        kernel,
        out_shape=jax.ShapeDtypeStruct((Bpad, 128), out_dtype),
        grid=(Bpad // TB,),
        in_specs=[
            pl.BlockSpec((TB, D), lambda i: (i, 0)),
            pl.BlockSpec((hpad, wlanes), lambda i: (0, 0), **w_spec_kwargs),  # resident
        ],
        out_specs=pl.BlockSpec((TB, 128), lambda i: (i, 0)),
        compiler_params=pltpu.CompilerParams(dimension_semantics=semantics),
    )(xp, w_packed)
    return out[:B, :C]


def make_sdgm_forward(w, pi_logits, **options):
    """Pack the SDGM parameters once and return a jitted `x -> class log-posteriors` fn.

    For batches of a few rows the per-call overhead dominates any kernel; this
    factory at least removes the per-call parameter repacking from the hot path.
    """
    w_packed, meta = pack_sdgm_params(w, pi_logits)

    @jax.jit
    def forward(x):
        return _sdgm_forward_packed(x, w_packed, meta, **options)

    return forward


def sdgm_classifier_forward(x, w, pi_logits, **options):
    """One-shot convenience wrapper (repacks parameters on every call; prefer
    make_sdgm_forward when parameters are reused across calls)."""
    w_packed, meta = pack_sdgm_params(w, pi_logits)
    return _sdgm_forward_packed(x, w_packed, meta, **options)


def sdgm_reference(x, w, pi_logits):
    """Pure-JAX reference for correctness checking."""
    B, D = x.shape
    K, H, C = w.shape
    phi = jnp.concatenate([jnp.ones((B, 1), x.dtype), x, -0.5 * x * x], axis=1)
    log_pi = jax.nn.log_softmax(pi_logits.reshape(-1)).reshape(K, C)
    g = jnp.einsum("bh,khc->bkc", phi, w) + log_pi[None]
    logits = jax.nn.logsumexp(g, axis=1)
    return jax.nn.log_softmax(logits, axis=-1)


if __name__ == "__main__":
    # Shapes consistent with SDGMClassifier(out_features=32, nb_classes=10,
    # nb_components=3, covtype='diag') applied to a small batch of 8.
    B, D, C, K = 8, 32, 10, 3
    H = 2 * D + 1

    key = jax.random.PRNGKey(0)
    kx, kw, kp, kb = jax.random.split(key, 4)
    x = jax.random.normal(kx, (B, D), dtype=jnp.float32)
    # Deterministic synthetic parameters (no checkpoint load).
    w = 0.1 * jax.random.normal(kw, (K, H, C), dtype=jnp.float32)
    pi_logits = 0.1 * jax.random.normal(kp, (K, C), dtype=jnp.float32)

    # Parameters packed once; `fwd` is the reusable jitted forward.
    fwd = make_sdgm_forward(w, pi_logits)
    out = jax.block_until_ready(fwd(x))
    ref = jax.block_until_ready(sdgm_reference(x, w, pi_logits))
    assert out.shape == (B, C)
    assert jnp.allclose(out, ref, atol=1e-5, rtol=1e-5), (
        f"max abs err {jnp.max(jnp.abs(out - ref))}")

    # Multi-tile batch through the same kernel (exercises grid > 1 + row padding).
    xb = jax.random.normal(kb, (1029, D), dtype=jnp.float32)
    out_b = jax.block_until_ready(jax.jit(sdgm_classifier_forward)(xb, w, pi_logits))
    ref_b = jax.block_until_ready(sdgm_reference(xb, w, pi_logits))
    assert out_b.shape == (1029, C)
    assert jnp.allclose(out_b, ref_b, atol=2e-5, rtol=2e-5), (
        f"max abs err {jnp.max(jnp.abs(out_b - ref_b))}")

    # TODO(synk): original utils_SDGM.py source not provided; semantics follow the
    # ICLR'21 SDGM with diag covariance; the 'full' covariance variant is not implemented.
    print("KERNEL_OK")
</pallas_src>

<mosaic_0001>
module attributes {stable_mosaic.version = 11 : i64} {
  func.func @_sdgm_kernel(%arg0: i32, %arg1: memref<8x32xf32, #tpu.memory_space<vmem>>, %arg2: memref<128x128xf32, #tpu.memory_space<vmem>>, %arg3: memref<8x128xf32, #tpu.memory_space<vmem>>) attributes {dimension_semantics = [#tpu.dimension_semantics<parallel>], iteration_bounds = array<i64: 1>, scalar_prefetch = 0 : i64, scratch_operands = 0 : i64, tpu.core_type = #tpu.core_type<tc>, window_params = [{transform_indices = @transform_0, window_bounds = array<i64: 8, 32>}, {pipeline_mode = #tpu.pipeline_mode<synchronous>, transform_indices = @transform_1, window_bounds = array<i64: 128, 128>}, {transform_indices = @transform_2, window_bounds = array<i64: 8, 128>}]} {
    %c0 = arith.constant 0 : index
    %c0_0 = arith.constant 0 : index
    %0 = vector.load %arg1[%c0, %c0_0] : memref<8x32xf32, #tpu.memory_space<vmem>>, vector<8x32xf32>
    %cst = arith.constant 1.000000e+00 : f32
    %1 = vector.broadcast %cst : f32 to vector<8x64xf32>
    %2 = arith.mulf %0, %0 : vector<8x32xf32>
    %3 = tpu.concatenate %0, %2, %1 in 1 : vector<8x32xf32>, vector<8x32xf32>, vector<8x64xf32> -> vector<8x128xf32>
    %c0_1 = arith.constant 0 : index
    %c0_2 = arith.constant 0 : index
    %4 = vector.load %arg2[%c0_1, %c0_2] : memref<128x128xf32, #tpu.memory_space<vmem>>, vector<128x128xf32>
    %cst_3 = arith.constant dense<0.000000e+00> : vector<8x128xf32>
    %5 = tpu.matmul %3, %4, %cst_3 {dimension_numbers = #tpu.dot_dimension_numbers<[1], [0], [0], [1], [0, 0, 1, 1], [], []>} : vector<8x128xf32>, vector<128x128xf32>, vector<8x128xf32> -> vector<8x128xf32>
    %c32_i32 = arith.constant 32 : i32
    %6 = tpu.dynamic_rotate %5 by %c32_i32 dim 1 : vector<8x128xf32>, i32 -> vector<8x128xf32>
    %7 = arith.maximumf %5, %6 : vector<8x128xf32>
    %c64_i32 = arith.constant 64 : i32
    %8 = tpu.dynamic_rotate %5 by %c64_i32 dim 1 : vector<8x128xf32>, i32 -> vector<8x128xf32>
    %9 = arith.maximumf %7, %8 : vector<8x128xf32>
    %c96_i32 = arith.constant 96 : i32
    %10 = tpu.dynamic_rotate %5 by %c96_i32 dim 1 : vector<8x128xf32>, i32 -> vector<8x128xf32>
    %11 = arith.maximumf %9, %10 : vector<8x128xf32>
    %12 = arith.subf %5, %11 : vector<8x128xf32>
    %13 = math.exp %12 : vector<8x128xf32>
    %c32_i32_4 = arith.constant 32 : i32
    %14 = tpu.dynamic_rotate %13 by %c32_i32_4 dim 1 : vector<8x128xf32>, i32 -> vector<8x128xf32>
    %15 = arith.addf %13, %14 : vector<8x128xf32>
    %c64_i32_5 = arith.constant 64 : i32
    %16 = tpu.dynamic_rotate %13 by %c64_i32_5 dim 1 : vector<8x128xf32>, i32 -> vector<8x128xf32>
    %17 = arith.addf %15, %16 : vector<8x128xf32>
    %c96_i32_6 = arith.constant 96 : i32
    %18 = tpu.dynamic_rotate %13 by %c96_i32_6 dim 1 : vector<8x128xf32>, i32 -> vector<8x128xf32>
    %19 = arith.addf %17, %18 : vector<8x128xf32>
    %20 = math.log %19 : vector<8x128xf32>
    %21 = arith.addf %11, %20 : vector<8x128xf32>
    %22 = tpu.iota {dimensions = array<i32: 1>} : vector<8x128xi32>
    %c10_i32 = arith.constant 10 : i32
    %23 = vector.broadcast %c10_i32 : i32 to vector<8x128xi32>
    %24 = arith.cmpi slt, %22, %23 : vector<8x128xi32>
    %cst_7 = arith.constant -1.000000e+30 : f32
    %25 = vector.broadcast %cst_7 : f32 to vector<8x128xf32>
    %26 = arith.select %24, %21, %25 : vector<8x128xi1>, vector<8x128xf32>
    %cst_8 = arith.constant dense<0xFF800000> : vector<8xf32>
    %27 = vector.multi_reduction <maximumf>, %26, %cst_8 [1] : vector<8x128xf32> to vector<8xf32>
    %28 = vector.shape_cast %27 : vector<8xf32> to vector<8x1xf32>
    %29 = vector.broadcast %28 : vector<8x1xf32> to vector<8x128xf32>
    %30 = arith.subf %26, %29 : vector<8x128xf32>
    %31 = math.exp %30 : vector<8x128xf32>
    %cst_9 = arith.constant dense<0.000000e+00> : vector<8xf32>
    %32 = vector.multi_reduction <add>, %31, %cst_9 [1] : vector<8x128xf32> to vector<8xf32>
    %33 = vector.shape_cast %32 : vector<8xf32> to vector<8x1xf32>
    %34 = math.log %33 : vector<8x1xf32>
    %35 = arith.addf %34, %28 : vector<8x1xf32>
    %36 = vector.broadcast %35 : vector<8x1xf32> to vector<8x128xf32>
    %37 = arith.subf %26, %36 : vector<8x128xf32>
    %c0_10 = arith.constant 0 : index
    %c0_11 = arith.constant 0 : index
    %38 = vector.load %arg3[%c0_10, %c0_11] : memref<8x128xf32, #tpu.memory_space<vmem>>, vector<8x128xf32>
    tpu.vector_store %arg3[%c0_10, %c0_11], %37 {strides = array<i32>} : memref<8x128xf32, #tpu.memory_space<vmem>>, vector<8x128xf32>,
    return
  }
  func.func @transform_0(%arg0: i32) -> (i32, i32) {
    %c0_i32 = arith.constant 0 : i32
    %c0_i32_0 = arith.constant 0 : i32
    return %arg0, %c0_i32 : i32, i32
  }
  func.func @transform_1(%arg0: i32) -> (i32, i32) {
    %c0_i32 = arith.constant 0 : i32
    %c0_i32_0 = arith.constant 0 : i32
    %c0_i32_1 = arith.constant 0 : i32
    return %c0_i32, %c0_i32_0 : i32, i32
  }
  func.func @transform_2(%arg0: i32) -> (i32, i32) {
    %c0_i32 = arith.constant 0 : i32
    %c0_i32_0 = arith.constant 0 : i32
    return %arg0, %c0_i32 : i32, i32
  }
}

</mosaic_0001>

<llo_original>
// kernel: forward.1
$region0: #{forward.1}
  #allocation0 [shape = 'u32[]', space=smem, size = 0x4, offset = 0x4, fixed_abs, tag = 'smem constant byte address 0x4 - core index']
  #allocation1 [shape = 'u32[144,128]{1,0:T(1,128)}', space=vmem, size = 0x12000, scoped, tag = 'internal scratch']
  %s0 = inlined_call_operand.hbm [shape: f32[8,32], index: 0, kind: input, shape index: {}]
  %s1 = inlined_call_operand.hbm [shape: f32[128,128], index: 1, kind: input, shape index: {}]
  %s2 = inlined_call_operand.hbm [shape: f32[8,128], index: 2, kind: output, shape index: {}]
  %s3 = sld [smem:[#allocation0]]
  $region26: #{forward.1} parent=0
    _
  %s5 = ssub.s32 1, %s3
  %s6 = scalar_select 0, %s5, %s3
  $region1: #{forward.1} parent=0
    #allocation2 [shape = 'u8[4096]{0}', space=vmem, size = 0x1000, scoped, tag = 'input window, operand 0, single buffered']
    #allocation3 [shape = 's32[1]{0}', space=sflag, size = 0x4, scoped, tag = 'scoped memory for forward.1']
    #allocation4 [shape = 's32[1]{0}', space=sflag, size = 0x4, scoped, tag = 'scoped memory for forward.1']
    #allocation5 [shape = 'u8[65536]{0}', space=vmem, size = 0x10000, scoped, tag = 'input window, operand 1, single buffered']
    #allocation6 [shape = 's32[1]{0}', space=sflag, size = 0x4, scoped, tag = 'scoped memory for forward.1']
    #allocation7 [shape = 'u8[4096]{0}', space=vmem, size = 0x1000, scoped, tag = 'output window, operand 0, single buffered']
    %7 = vsyncpa [#allocation3], 0
    %8 = vsyncpa [#allocation6], 0
    %9 = vsyncpa [#allocation4], 0
    // Predicated region
    $region2: #{forward.1} parent=1 // pred_check
      _
    $region3: #{forward.1} parent=1 // pred_check_branch
      %11 = sbr.rel (0) target = $region5
    $region4: #{forward.1} parent=1 // pred_region
      %s13 = ssub.s32 128, 128
      %14 = vsyncadd [#allocation3], %s13
      %s16 = sshll.u32 [#allocation2], 4
      %s17 = int_to_ptr.vmem [resolvable:$true] %s16
      %19 = dma.hbm_to_vmem [thread:$0]  %s0, 128, %s17, [#allocation3]
    $region5: #{forward.1} parent=1 // pred_fallthru
      _
    // Predicated region
    $region6: #{forward.1} parent=1 // pred_check
      _
    $region7: #{forward.1} parent=1 // pred_check_branch
      %21 = sbr.rel (0) target = $region9
    $region8: #{forward.1} parent=1 // pred_region
      %s23 = ssub.s32 2048, 2048
      %24 = vsyncadd [#allocation6], %s23
      %s25 = sshll.u32 [#allocation5], 4
      %s26 = int_to_ptr.vmem [resolvable:$true] %s25
      %31 = dma.hbm_to_vmem [thread:$0]  %s1, 2048, %s26, [#allocation6], 128, 128, 8
    $region9: #{forward.1} parent=1 // pred_fallthru
      _
    // Predicated region
    $region10: #{forward.1} parent=1 // pred_check
      _
    $region11: #{forward.1} parent=1 // pred_check_branch
      %33 = sbr.rel (0) target = $region13
    $region12: #{forward.1} parent=1 // pred_region
      %34 = dma.done [#allocation3], 128
    $region13: #{forward.1} parent=1 // pred_fallthru
      _
    // Predicated region
    $region14: #{forward.1} parent=1 // pred_check
      _
    $region15: #{forward.1} parent=1 // pred_check_branch
      %36 = sbr.rel (0) target = $region17
    $region16: #{forward.1} parent=1 // pred_region
      %37 = dma.done [#allocation6], 2048
    $region17: #{forward.1} parent=1 // pred_fallthru
      _
    %v38 = vld [vmem:[#allocation2] sm:$0xff]
    %v39 = vmul.f32 %v38, %v38
    %41 = vrot.lane.b32.xlu0 %v39, 32
    %v42 = vpop.permute.xlu0 %41
    %vm44 = vcmask 261120
    %v45 = vsel %vm44, %v38, %v42
    %vm46 = vcmask 523264
    %v47 = vsel %vm46, %v45, 1.0
    %v48 = vld [vmem:[#allocation5] sm:$0xff]
    %v49 = vld [vmem:[#allocation5 + $0x8] sm:$0xff]
    %v50 = vld [vmem:[#allocation5 + $0x10] sm:$0xff]
    %v51 = vld [vmem:[#allocation5 + $0x18] sm:$0xff]
    %v52 = vld [vmem:[#allocation5 + $0x20] sm:$0xff]
    %v53 = vld [vmem:[#allocation5 + $0x28] sm:$0xff]
    %v54 = vld [vmem:[#allocation5 + $0x30] sm:$0xff]
    %v55 = vld [vmem:[#allocation5 + $0x38] sm:$0xff]
    %v56 = vld [vmem:[#allocation5 + $0x40] sm:$0xff]
    %v57 = vld [vmem:[#allocation5 + $0x48] sm:$0xff]
    %v58 = vld [vmem:[#allocation5 + $0x50] sm:$0xff]
    %v59 = vld [vmem:[#allocation5 + $0x58] sm:$0xff]
    %v60 = vld [vmem:[#allocation5 + $0x60] sm:$0xff]
    %v61 = vld [vmem:[#allocation5 + $0x68] sm:$0xff]
    %v62 = vld [vmem:[#allocation5 + $0x70] sm:$0xff]
    %v63 = vld [vmem:[#allocation5 + $0x78] sm:$0xff]
    %64 = vmatprep.subr.mxu0 0.0
    %65 = vmatpush1.msra.mxu0 %v48
    %66 = vmatprep.subr.mxu0 0.0
    %67 = vmatpush1.msra.mxu0 %v49
    %68 = vmatprep.subr.mxu0 0.0
    %69 = vmatpush1.msra.mxu0 %v50
    %70 = vmatprep.subr.mxu0 0.0
    %71 = vmatpush1.msra.mxu0 %v51
    %72 = vmatprep.subr.mxu0 0.0
    %73 = vmatpush1.msra.mxu0 %v52
    %74 = vmatprep.subr.mxu0 0.0
    %75 = vmatpush1.msra.mxu0 %v53
    %76 = vmatprep.subr.mxu0 0.0
    %77 = vmatpush1.msra.mxu0 %v54
    %78 = vmatprep.subr.mxu0 0.0
    %79 = vmatpush1.msra.mxu0 %v55
    %80 = vmatprep.subr.mxu0 0.0
    %81 = vmatpush1.msra.mxu0 %v56
    %82 = vmatprep.subr.mxu0 0.0
    %83 = vmatpush1.msra.mxu0 %v57
    %84 = vmatprep.subr.mxu0 0.0
    %85 = vmatpush1.msra.mxu0 %v58
    %86 = vmatprep.subr.mxu0 0.0
    %87 = vmatpush1.msra.mxu0 %v59
    %88 = vmatprep.subr.mxu0 0.0
    %89 = vmatpush1.msra.mxu0 %v60
    %90 = vmatprep.subr.mxu0 0.0
    %91 = vmatpush1.msra.mxu0 %v61
    %92 = vmatprep.subr.mxu0 0.0
    %93 = vmatpush1.msra.mxu0 %v62
    %94 = vmatprep.subr.mxu0 0.0
    %95 = vmatpush1.msra.mxu0 %v63
    %96 = vmatprep.subr.mxu0 0.0
    %97 = vmatpush1.msra.mxu0 0.0
    %98 = vmatprep.subr.mxu0 0.0
    %99 = vmatpush1.msra.mxu0 0.0
    %100 = vmatprep.subr.mxu0 0.0
    %101 = vmatpush1.msra.mxu0 0.0
    %102 = vmatprep.subr.mxu0 0.0
    %103 = vmatpush1.msra.mxu0 0.0
    %104 = vmatprep.subr.mxu0 0.0
    %105 = vmatpush1.msra.mxu0 0.0
    %106 = vmatprep.subr.mxu0 0.0
    %107 = vmatpush1.msra.mxu0 0.0
    %108 = vmatprep.subr.mxu0 0.0
    %109 = vmatpush1.msra.mxu0 0.0
    %110 = vmatprep.subr.mxu0 0.0
    %111 = vmatpush1.msra.mxu0 0.0
    %112 = vmatprep.subr.mxu0 0.0
    %113 = vmatpush1.msra.mxu0 0.0
    %114 = vmatprep.subr.mxu0 0.0
    %115 = vmatpush1.msra.mxu0 0.0
    %116 = vmatprep.subr.mxu0 0.0
    %117 = vmatpush1.msra.mxu0 0.0
    %118 = vmatprep.subr.mxu0 0.0
    %119 = vmatpush1.msra.mxu0 0.0
    %120 = vmatprep.subr.mxu0 0.0
    %121 = vmatpush1.msra.mxu0 0.0
    %122 = vmatprep.subr.mxu0 0.0
    %123 = vmatpush1.msra.mxu0 0.0
    %124 = vmatprep.subr.mxu0 0.0
    %125 = vmatpush1.msra.mxu0 0.0
    %126 = vmatprep.subr.mxu0 0.0
    %127 = vmatpush1.msra.mxu0 0.0
    %128 = vmatprep.mubr.f32.mxu0 0.0
    %129 = vmatmul.mubr.f32.gmra.mrb[0].mxu0 %v47
    %v130 = vpop.f32.mrb[0].mxu0
    %v131 = vadd.f32 0.0, %v130
    %v132 = vpop.f32.mrb[0].mxu0
    %133 = vdwg.mxu0
    %134 = vrot.lane.b32.xlu0 %v131, 32
    %v135 = vpop.permute.xlu0 %134
    %v136 = vmax.f32 %v131, %v135
    %137 = vrot.lane.b32.xlu0 %v131, 64
    %v138 = vpop.permute.xlu0 %137
    %v139 = vmax.f32 %v136, %v138
    %140 = vrot.lane.b32.xlu0 %v131, 96
    %v141 = vpop.permute.xlu0 %140
    %v142 = vmax.f32 %v139, %v141
    %v143 = vsub.f32 %v131, %v142
    %v144 = vmul.f32 %v143, 1.442695
    %v145 = vpow.pop %v144
    %146 = vrot.lane.b32.xlu0 %v145, 32
    %v147 = vpop.permute.xlu0 %146
    %v148 = vadd.f32 %v145, %v147
    %149 = vrot.lane.b32.xlu0 %v145, 64
    %v150 = vpop.permute.xlu0 %149
    %v151 = vadd.f32 %v148, %v150
    %152 = vrot.lane.b32.xlu0 %v145, 96
    %v153 = vpop.permute.xlu0 %152
    %v154 = vadd.f32 %v151, %v153
    %v155 = vlog2.pop %v154
    %v156 = vmul.f32 %v155, 0.6931472
    %v157 = vadd.f32 %v142, %v156
    %v158 = vlaneseq
    %v159 = vand.u32 %v158, 127
    %vm160 = vcmp.lt.s32.totalorder %v159, 10
    %v161 = vsel %vm160, %v157, -1e+30
    %162 = vmax.xlane.f32.xlu0 %v161
    %v163 = vpop.xlane.xlu0 %162
    %v164 = vsub.f32 %v161, %v163
    %v165 = vmul.f32 %v164, 1.442695
    %v166 = vpow.pop %v165
    %167 = vadd.xlane.f32.xlu0 %v166
    %v168 = vpop.xlane.xlu0 %167
    %v169 = vlog2.pop %v168
    %v170 = vmul.f32 %v169, 0.6931472
    %v171 = vadd.f32 %v170, %v163
    %v172 = vsub.f32 %v161, %v171
    %173 = vst [vmem:[#allocation7] sm:$0xff] %v172
    // Predicated region
    $region18: #{forward.1} parent=1 // pred_check
      _
    $region19: #{forward.1} parent=1 // pred_check_branch
      %175 = sbr.rel (0) target = $region21
    $region20: #{forward.1} parent=1 // pred_region
      %s177 = ssub.s32 128, 128
      %178 = vsyncadd [#allocation4], %s177
      %s180 = sshll.u32 [#allocation7], 4
      %s181 = int_to_ptr.vmem [resolvable:$true] %s180
      %183 = dma.vmem_to_hbm [thread:$0]  %s181, 128, %s2, [#allocation4]
    $region21: #{forward.1} parent=1 // pred_fallthru
      _
    // Predicated region
    $region22: #{forward.1} parent=1 // pred_check
      _
    $region23: #{forward.1} parent=1 // pred_check_branch
      %185 = sbr.rel (0) target = $region25
    $region24: #{forward.1} parent=1 // pred_region
      %186 = dma.done [#allocation4], 128
    $region25: #{forward.1} parent=1 // pred_fallthru
      _
    %187 = vsyncpa [#allocation3], 1
    %188 = vsyncpa [#allocation6], 1
    %189 = vsyncpa [#allocation4], 1

</llo_original>
